<compile_context>
chip_gen: v7x
topology: tpu7x:2x2x1
jax: 0.10.0
libtpu: 0.0.40
codegen_flags: <defaults>
</compile_context>

<pallas_src>
import functools

import jax
import jax.numpy as jnp
from jax.experimental import pallas as pl
from jax.experimental.pallas import tpu as pltpu


def _se_kernel(x_ref, w1_ref, b1_ref, w2_ref, b2_ref, o_ref, *, hw_true):
    """One batch-tile of the SE block.

    x_ref  : (TB, C, HWp)  input activations (HWp padded to multiple of 128)
    w1_ref : (C, Cr)       fc1 weight (in, out)
    b1_ref : (1, Cr)       fc1 bias
    w2_ref : (Cr, C)       fc2 weight (in, out)
    b2_ref : (1, C)        fc2 bias
    o_ref  : (TB, C, HWp)  output
    hw_true: true (unpadded) number of spatial positions, static.
    """
    x = x_ref[...]                                   # (TB, C, HWp), native dtype
    tb, c, hwp = x.shape
    cr = w1_ref.shape[1]
    n_chunks = hwp // 128

    # --- Squeeze: global average pool over spatial positions -----------------
    # VPU partial accumulation over 128-lane chunks, then ONE cross-lane (XLU)
    # reduce per channel row. Padded lanes are zero so the sum is exact; divide
    # by the true HW.
    acc = x[..., 0:128].astype(jnp.float32)          # (TB, C, 128) f32
    for k in range(1, n_chunks):                     # short, statically unrolled
        acc = acc + x[..., k * 128:(k + 1) * 128].astype(jnp.float32)
    pooled = jnp.sum(acc, axis=-1) * (1.0 / hw_true)  # (TB, C) f32

    # --- Excitation: fc1 -> relu -> fc2 -> sigmoid ---------------------------
    w1 = w1_ref[...].astype(jnp.float32)
    b1 = b1_ref[...].astype(jnp.float32)
    w2 = w2_ref[...].astype(jnp.float32)
    b2 = b2_ref[...].astype(jnp.float32)
    if c <= 32 and cr <= 32:
        # Tiny MLP: keep it on the VPU, no MXU round-trip on the serial path.
        h = jnp.sum(pooled[:, :, None] * w1[None, :, :], axis=1) + b1  # (TB, Cr)
        h = jnp.maximum(h, 0.0)
        s = jnp.sum(h[:, :, None] * w2[None, :, :], axis=1) + b2       # (TB, C)
    else:
        h = jnp.dot(pooled, w1, preferred_element_type=jnp.float32) + b1
        h = jnp.maximum(h, 0.0)
        s = jnp.dot(h, w2, preferred_element_type=jnp.float32) + b2
    s = jax.nn.sigmoid(s)                            # (TB, C) f32

    # --- Scale: broadcast channel gates over spatial positions ---------------
    # Cast the gate down once; keep the big tile in its native dtype and
    # broadcast exactly once (no per-chunk re-broadcast).
    gate = s.astype(x.dtype)[:, :, None]             # (TB, C, 1)
    o_ref[...] = x * gate


def se_block(x, w1, b1, w2, b2, *, vmem_tile_budget_bytes=16 * 1024 * 1024):
    """x: (B, C, H, W). w1: (C, Cr), b1: (Cr,), w2: (Cr, C), b2: (C,)."""
    B, C, H, W = x.shape
    HW = H * W
    Cr = w1.shape[1]

    # Lane-dense fast axis: pad HW up to a multiple of 128 (zeros).
    HWp = ((HW + 127) // 128) * 128
    x_flat = x.reshape(B, C, HW)
    if HWp != HW:
        x_flat = jnp.pad(x_flat, ((0, 0), (0, 0), (0, HWp - HW)))

    # Batch-tile size: keep double-buffered in+out tiles under the budget
    # (safe on v7x's 64 MiB VMEM / 32 MiB scoped default), but keep at least
    # 2 grid steps so the DMA pipeline / megacore split has work to overlap.
    itemsize = jnp.dtype(x.dtype).itemsize
    per_batch_row = 4 * C * HWp * itemsize           # 2x(in) + 2x(out) buffers
    TB = max(1, min(B, vmem_tile_budget_bytes // max(per_batch_row, 1)))
    if B >= 2:
        TB = min(TB, max(1, B // 2))
    while B % TB:
        TB -= 1
    grid = (B // TB,)

    b1_2d = b1.reshape(1, Cr)
    b2_2d = b2.reshape(1, C)

    kernel = functools.partial(_se_kernel, hw_true=float(HW))

    out_flat = pl.pallas_call(
        kernel,
        out_shape=jax.ShapeDtypeStruct((B, C, HWp), x.dtype),
        grid_spec=pltpu.PrefetchScalarGridSpec(
            num_scalar_prefetch=0,
            grid=grid,
            in_specs=[
                pl.BlockSpec((TB, C, HWp), lambda i: (i, 0, 0)),
                pl.BlockSpec((C, Cr), lambda i: (0, 0)),   # resident weights
                pl.BlockSpec((1, Cr), lambda i: (0, 0)),
                pl.BlockSpec((Cr, C), lambda i: (0, 0)),
                pl.BlockSpec((1, C), lambda i: (0, 0)),
            ],
            out_specs=pl.BlockSpec((TB, C, HWp), lambda i: (i, 0, 0)),
        ),
        compiler_params=pltpu.CompilerParams(
            dimension_semantics=("parallel",),             # batch tiles independent
            vmem_limit_bytes=32 * 1024 * 1024,
        ),
    )(x_flat, w1, b1_2d, w2, b2_2d)

    if HWp != HW:
        out_flat = out_flat[..., :HW]
    return out_flat.reshape(B, C, H, W)


def se_block_ref(x, w1, b1, w2, b2):
    """Pure-JAX reference mirroring the PyTorch forward."""
    B, C, H, W = x.shape
    pooled = jnp.mean(x.reshape(B, C, -1), axis=-1)
    h = jnp.maximum(pooled @ w1 + b1, 0.0)
    s = jax.nn.sigmoid(h @ w2 + b2)
    return (x.reshape(B, C, -1) * s[:, :, None]).reshape(B, C, H, W)


if __name__ == "__main__":
    # SEBlock(channels=4, reduce_ratio=2) -> fc1: 4->2, fc2: 2->4
    B, C, H, W = 2, 4, 16, 16
    reduce_ratio = 2
    Cr = C // reduce_ratio

    key = jax.random.PRNGKey(0)
    kx, kw1, kb1, kw2, kb2 = jax.random.split(key, 5)

    x = jax.random.normal(kx, (B, C, H, W), dtype=jnp.float32)
    # Deterministic synthetic params (nn.Linear weights stored as (in, out)).
    w1 = jax.random.normal(kw1, (C, Cr), dtype=jnp.float32) * 0.5
    b1 = jax.random.normal(kb1, (Cr,), dtype=jnp.float32) * 0.1
    w2 = jax.random.normal(kw2, (Cr, C), dtype=jnp.float32) * 0.5
    b2 = jax.random.normal(kb2, (C,), dtype=jnp.float32) * 0.1

    out = jax.block_until_ready(se_block(x, w1, b1, w2, b2))
    ref = se_block_ref(x, w1, b1, w2, b2)
    assert out.shape == (B, C, H, W)
    assert jnp.allclose(out, ref, atol=1e-5, rtol=1e-5), "mismatch vs reference"

    # Also exercise the non-128-multiple spatial path (HW=100 -> padded to 128).
    H2 = W2 = 10
    x2 = jax.random.normal(kx, (B, C, H2, W2), dtype=jnp.float32)
    out2 = jax.block_until_ready(se_block(x2, w1, b1, w2, b2))
    ref2 = se_block_ref(x2, w1, b1, w2, b2)
    assert out2.shape == (B, C, H2, W2)
    assert jnp.allclose(out2, ref2, atol=1e-5, rtol=1e-5), "mismatch vs reference (padded HW)"

    print("KERNEL_OK")
</pallas_src>

<mosaic_0001>
module attributes {stable_mosaic.version = 11 : i64} {
  func.func @_se_kernel(%arg0: i32, %arg1: memref<1x4x256xf32, #tpu.memory_space<vmem>>, %arg2: memref<4x2xf32, #tpu.memory_space<vmem>>, %arg3: memref<1x2xf32, #tpu.memory_space<vmem>>, %arg4: memref<2x4xf32, #tpu.memory_space<vmem>>, %arg5: memref<1x4xf32, #tpu.memory_space<vmem>>, %arg6: memref<1x4x256xf32, #tpu.memory_space<vmem>>) attributes {dimension_semantics = [#tpu.dimension_semantics<parallel>], iteration_bounds = array<i64: 2>, scalar_prefetch = 0 : i64, scratch_operands = 0 : i64, tpu.core_type = #tpu.core_type<tc>, window_params = [{transform_indices = @transform_0, window_bounds = array<i64: 1, 4, 256>}, {pipeline_mode = #tpu.pipeline_mode<synchronous>, transform_indices = @transform_1, window_bounds = array<i64: 4, 2>}, {pipeline_mode = #tpu.pipeline_mode<synchronous>, transform_indices = @transform_2, window_bounds = array<i64: 1, 2>}, {pipeline_mode = #tpu.pipeline_mode<synchronous>, transform_indices = @transform_3, window_bounds = array<i64: 2, 4>}, {pipeline_mode = #tpu.pipeline_mode<synchronous>, transform_indices = @transform_4, window_bounds = array<i64: 1, 4>}, {transform_indices = @transform_5, window_bounds = array<i64: 1, 4, 256>}]} {
    %c0 = arith.constant 0 : index
    %c0_0 = arith.constant 0 : index
    %c0_1 = arith.constant 0 : index
    %0 = vector.load %arg1[%c0, %c0_0, %c0_1] : memref<1x4x256xf32, #tpu.memory_space<vmem>>, vector<1x4x256xf32>
    %1 = vector.extract_strided_slice %0 {offsets = [0, 0, 0], sizes = [1, 4, 128], strides = [1, 1, 1]} : vector<1x4x256xf32> to vector<1x4x128xf32>
    %2 = vector.extract_strided_slice %0 {offsets = [0, 0, 128], sizes = [1, 4, 128], strides = [1, 1, 1]} : vector<1x4x256xf32> to vector<1x4x128xf32>
    %3 = arith.addf %1, %2 : vector<1x4x128xf32>
    %cst = arith.constant dense<0.000000e+00> : vector<1x4xf32>
    %4 = vector.multi_reduction <add>, %3, %cst [2] : vector<1x4x128xf32> to vector<1x4xf32>
    %cst_2 = arith.constant 3.906250e-03 : f32
    %5 = vector.broadcast %cst_2 : f32 to vector<1x4xf32>
    %6 = arith.mulf %4, %5 : vector<1x4xf32>
    %c0_3 = arith.constant 0 : index
    %c0_4 = arith.constant 0 : index
    %7 = vector.load %arg2[%c0_3, %c0_4] : memref<4x2xf32, #tpu.memory_space<vmem>>, vector<4x2xf32>
    %c0_5 = arith.constant 0 : index
    %c0_6 = arith.constant 0 : index
    %8 = vector.load %arg3[%c0_5, %c0_6] : memref<1x2xf32, #tpu.memory_space<vmem>>, vector<1x2xf32>
    %c0_7 = arith.constant 0 : index
    %c0_8 = arith.constant 0 : index
    %9 = vector.load %arg4[%c0_7, %c0_8] : memref<2x4xf32, #tpu.memory_space<vmem>>, vector<2x4xf32>
    %c0_9 = arith.constant 0 : index
    %c0_10 = arith.constant 0 : index
    %10 = vector.load %arg5[%c0_9, %c0_10] : memref<1x4xf32, #tpu.memory_space<vmem>>, vector<1x4xf32>
    %11 = vector.shape_cast %6 : vector<1x4xf32> to vector<1x4x1xf32>
    %12 = vector.shape_cast %7 : vector<4x2xf32> to vector<1x4x2xf32>
    %13 = vector.broadcast %11 : vector<1x4x1xf32> to vector<1x4x2xf32>
    %14 = arith.mulf %13, %12 : vector<1x4x2xf32>
    %cst_11 = arith.constant dense<0.000000e+00> : vector<1x2xf32>
    %15 = vector.multi_reduction <add>, %14, %cst_11 [1] : vector<1x4x2xf32> to vector<1x2xf32>
    %16 = arith.addf %15, %8 : vector<1x2xf32>
    %cst_12 = arith.constant 0.000000e+00 : f32
    %17 = vector.broadcast %cst_12 : f32 to vector<1x2xf32>
    %18 = arith.maximumf %16, %17 : vector<1x2xf32>
    %19 = vector.shape_cast %18 : vector<1x2xf32> to vector<1x2x1xf32>
    %20 = vector.shape_cast %9 : vector<2x4xf32> to vector<1x2x4xf32>
    %21 = vector.broadcast %19 : vector<1x2x1xf32> to vector<1x2x4xf32>
    %22 = arith.mulf %21, %20 : vector<1x2x4xf32>
    %cst_13 = arith.constant dense<0.000000e+00> : vector<1x4xf32>
    %23 = vector.multi_reduction <add>, %22, %cst_13 [1] : vector<1x2x4xf32> to vector<1x4xf32>
    %24 = arith.addf %23, %10 : vector<1x4xf32>
    %25 = arith.negf %24 : vector<1x4xf32>
    %26 = math.exp %25 : vector<1x4xf32>
    %cst_14 = arith.constant 1.000000e+00 : f32
    %27 = vector.broadcast %cst_14 : f32 to vector<1x4xf32>
    %28 = arith.addf %27, %26 : vector<1x4xf32>
    %29 = arith.divf %27, %28 : vector<1x4xf32>
    %30 = vector.shape_cast %29 : vector<1x4xf32> to vector<1x4x1xf32>
    %31 = vector.broadcast %30 : vector<1x4x1xf32> to vector<1x4x256xf32>
    %32 = arith.mulf %0, %31 : vector<1x4x256xf32>
    %c0_15 = arith.constant 0 : index
    %c0_16 = arith.constant 0 : index
    %c0_17 = arith.constant 0 : index
    %33 = vector.load %arg6[%c0_15, %c0_16, %c0_17] : memref<1x4x256xf32, #tpu.memory_space<vmem>>, vector<1x4x256xf32>
    tpu.vector_store %arg6[%c0_15, %c0_16, %c0_17], %32 {strides = array<i32>} : memref<1x4x256xf32, #tpu.memory_space<vmem>>, vector<1x4x256xf32>,
    return
  }
  func.func @transform_0(%arg0: i32) -> (i32, i32, i32) {
    %c0_i32 = arith.constant 0 : i32
    %c0_i32_0 = arith.constant 0 : i32
    %c0_i32_1 = arith.constant 0 : i32
    return %arg0, %c0_i32, %c0_i32_0 : i32, i32, i32
  }
  func.func @transform_1(%arg0: i32) -> (i32, i32) {
    %c0_i32 = arith.constant 0 : i32
    %c0_i32_0 = arith.constant 0 : i32
    %c0_i32_1 = arith.constant 0 : i32
    return %c0_i32, %c0_i32_0 : i32, i32
  }
  func.func @transform_2(%arg0: i32) -> (i32, i32) {
    %c0_i32 = arith.constant 0 : i32
    %c0_i32_0 = arith.constant 0 : i32
    %c0_i32_1 = arith.constant 0 : i32
    return %c0_i32, %c0_i32_0 : i32, i32
  }
  func.func @transform_3(%arg0: i32) -> (i32, i32) {
    %c0_i32 = arith.constant 0 : i32
    %c0_i32_0 = arith.constant 0 : i32
    %c0_i32_1 = arith.constant 0 : i32
    return %c0_i32, %c0_i32_0 : i32, i32
  }
  func.func @transform_4(%arg0: i32) -> (i32, i32) {
    %c0_i32 = arith.constant 0 : i32
    %c0_i32_0 = arith.constant 0 : i32
    %c0_i32_1 = arith.constant 0 : i32
    return %c0_i32, %c0_i32_0 : i32, i32
  }
  func.func @transform_5(%arg0: i32) -> (i32, i32, i32) {
    %c0_i32 = arith.constant 0 : i32
    %c0_i32_0 = arith.constant 0 : i32
    %c0_i32_1 = arith.constant 0 : i32
    return %arg0, %c0_i32, %c0_i32_0 : i32, i32, i32
  }
}

</mosaic_0001>

<llo_original>
// kernel: tpu_custom_call.1
$region0: #{tpu_custom_call.1}
  #allocation0 [shape = 'u32[]', space=smem, size = 0x4, offset = 0x4, fixed_abs, tag = 'smem constant byte address 0x4 - core index']
  #allocation1 [shape = 'u32[144,128]{1,0:T(1,128)}', space=vmem, size = 0x12000, scoped, tag = 'internal scratch']
  %s0 = inlined_call_operand.hbm [shape: f32[2,4,256], index: 0, kind: input, shape index: {}]
  %s1 = inlined_call_operand.vmem [shape: f32[4,2], index: 1, kind: input, shape index: {}]
  %s2 = inlined_call_operand.vmem [shape: f32[1,2], index: 2, kind: input, shape index: {}]
  %s3 = inlined_call_operand.vmem [shape: f32[2,4], index: 3, kind: input, shape index: {}]
  %s4 = inlined_call_operand.vmem [shape: f32[1,4], index: 4, kind: input, shape index: {}]
  %s5 = inlined_call_operand.hbm [shape: f32[2,4,256], index: 5, kind: output, shape index: {}]
  %s6 = sld [smem:[#allocation0]]
  $region57: #{tpu_custom_call.1} parent=0
    _
  %s8 = ssub.s32 1, %s6
  %s9 = scalar_select 0, %s8, %s6
  $region1: #{tpu_custom_call.1} parent=0
    #allocation2 [shape = 'u8[8192]{0}', space=vmem, size = 0x2000, scoped, tag = 'input window, operand 0']
    #allocation3 [shape = 's32[2]{0}', space=sflag, size = 0x8, scoped, tag = 'scoped memory for tpu_custom_call.1']
    #allocation4 [shape = 's32[2]{0}', space=sflag, size = 0x8, scoped, tag = 'scoped memory for tpu_custom_call.1']
    #allocation5 [shape = 'u8[8192]{0}', space=vmem, size = 0x2000, scoped, tag = 'output window, operand 0']
    %10 = vsyncpa [#allocation3], 0
    %s11 = scalar_lea.sflag [#allocation3], 1
    %12 = vsyncpa %s11, 0
    %13 = vsyncpa [#allocation4], 0
    %s14 = scalar_lea.sflag [#allocation4], 1
    %15 = vsyncpa %s14, 0
    loop: start=0, step=1, limit=4
    $region2: #{tpu_custom_call.1} parent=1 // loop_pre_header
      _
    $region3: #{tpu_custom_call.1} parent=1 // loop_header
      %s17 = sphi 0, %s21
      %p18 = scmp.ge.s32.totalorder %s17, 4
      %s27 = sphi 0, %s29
      %s30 = sphi 0, %s27
      %s31 = sphi 0, %s30
      %s47 = sphi 0, %s31
      %s51 = sphi 0, %s51
      %s53 = sphi 0, %s51
      %s54 = sphi 0, %s53
      %s68 = sphi 0, %s54
      %s72 = sphi 0, %s72
      %s74 = sphi 0, %s72
      %s75 = sphi 0, %s74
      %s89 = sphi 0, %s75
      %s93 = sphi 0, %s93
      %s95 = sphi 0, %s93
      %s96 = sphi 0, %s95
      %s110 = sphi 0, %s96
      %s114 = sphi 0, %s114
      %s116 = sphi 0, %s114
      %s117 = sphi 0, %s116
      %s131 = sphi 0, %s117
      %s137 = sphi 0, %s139
      %s140 = sphi 0, %s137
      %s141 = sphi 0, %s140
      %s157 = sphi 0, %s141
    $region4: #{tpu_custom_call.1} parent=1 // loop_header_branch
      %20 = sbr.rel (%p18) target = $region8
    $region5: #{tpu_custom_call.1} parent=1 // loop_body
      %s22 = ssub.s32 %s17, 1
      %s23 = ssub.s32 %s17, 2
      %s24 = sadd.s32 %s17, 1
      %s25 = ssub.s32 %s17, %s24
      %p26 = scmp.eq.s32.totalorder %s25, 0
      %s28 = sadd.s32 %s27, 1
      %s29 = scalar_select %p26, %s27, %s28
      %p32 = pneg %p26
      %p33 = scmp.eq.s32.totalorder %s17, 1
      %p34 = por %p32, %p33
      %p35 = scmp.ne.s32.totalorder %s27, %s30
      %p36 = scmp.eq.s32.totalorder %s17, 0
      %p37 = por %p35, %p36
      %p38 = scmp.ne.s32.totalorder %s27, %s30
      %p39 = scmp.eq.s32.totalorder %s22, 1
      %p40 = por %p38, %p39
      %p41 = scmp.ne.s32.totalorder %s30, %s31
      %p42 = scmp.eq.s32.totalorder %s22, 0
      %p43 = por %p41, %p42
      %p44 = scmp.ne.s32.totalorder %s30, %s31
      %p45 = scmp.eq.s32.totalorder %s23, 1
      %p46 = por %p44, %p45
      %p48 = scmp.ne.s32.totalorder %s31, %s47
      %p49 = scmp.eq.s32.totalorder %s23, 0
      %p50 = por %p48, %p49
      %s52 = sadd.s32 %s51, 1
      %p55 = scmp.eq.s32.totalorder %s17, 1
      %p56 = scmp.ne.s32.totalorder %s51, %s53
      %p57 = scmp.eq.s32.totalorder %s17, 0
      %p58 = por %p56, %p57
      %p59 = scmp.ne.s32.totalorder %s51, %s53
      %p60 = scmp.eq.s32.totalorder %s22, 1
      %p61 = por %p59, %p60
      %p62 = scmp.ne.s32.totalorder %s53, %s54
      %p63 = scmp.eq.s32.totalorder %s22, 0
      %p64 = por %p62, %p63
      %p65 = scmp.ne.s32.totalorder %s53, %s54
      %p66 = scmp.eq.s32.totalorder %s23, 1
      %p67 = por %p65, %p66
      %p69 = scmp.ne.s32.totalorder %s54, %s68
      %p70 = scmp.eq.s32.totalorder %s23, 0
      %p71 = por %p69, %p70
      %s73 = sadd.s32 %s72, 1
      %p76 = scmp.eq.s32.totalorder %s17, 1
      %p77 = scmp.ne.s32.totalorder %s72, %s74
      %p78 = scmp.eq.s32.totalorder %s17, 0
      %p79 = por %p77, %p78
      %p80 = scmp.ne.s32.totalorder %s72, %s74
      %p81 = scmp.eq.s32.totalorder %s22, 1
      %p82 = por %p80, %p81
      %p83 = scmp.ne.s32.totalorder %s74, %s75
      %p84 = scmp.eq.s32.totalorder %s22, 0
      %p85 = por %p83, %p84
      %p86 = scmp.ne.s32.totalorder %s74, %s75
      %p87 = scmp.eq.s32.totalorder %s23, 1
      %p88 = por %p86, %p87
      %p90 = scmp.ne.s32.totalorder %s75, %s89
      %p91 = scmp.eq.s32.totalorder %s23, 0
      %p92 = por %p90, %p91
      %s94 = sadd.s32 %s93, 1
      %p97 = scmp.eq.s32.totalorder %s17, 1
      %p98 = scmp.ne.s32.totalorder %s93, %s95
      %p99 = scmp.eq.s32.totalorder %s17, 0
      %p100 = por %p98, %p99
      %p101 = scmp.ne.s32.totalorder %s93, %s95
      %p102 = scmp.eq.s32.totalorder %s22, 1
      %p103 = por %p101, %p102
      %p104 = scmp.ne.s32.totalorder %s95, %s96
      %p105 = scmp.eq.s32.totalorder %s22, 0
      %p106 = por %p104, %p105
      %p107 = scmp.ne.s32.totalorder %s95, %s96
      %p108 = scmp.eq.s32.totalorder %s23, 1
      %p109 = por %p107, %p108
      %p111 = scmp.ne.s32.totalorder %s96, %s110
      %p112 = scmp.eq.s32.totalorder %s23, 0
      %p113 = por %p111, %p112
      %s115 = sadd.s32 %s114, 1
      %p118 = scmp.eq.s32.totalorder %s17, 1
      %p119 = scmp.ne.s32.totalorder %s114, %s116
      %p120 = scmp.eq.s32.totalorder %s17, 0
      %p121 = por %p119, %p120
      %p122 = scmp.ne.s32.totalorder %s114, %s116
      %p123 = scmp.eq.s32.totalorder %s22, 1
      %p124 = por %p122, %p123
      %p125 = scmp.ne.s32.totalorder %s116, %s117
      %p126 = scmp.eq.s32.totalorder %s22, 0
      %p127 = por %p125, %p126
      %p128 = scmp.ne.s32.totalorder %s116, %s117
      %p129 = scmp.eq.s32.totalorder %s23, 1
      %p130 = por %p128, %p129
      %p132 = scmp.ne.s32.totalorder %s117, %s131
      %p133 = scmp.eq.s32.totalorder %s23, 0
      %p134 = por %p132, %p133
      %s135 = ssub.s32 %s17, %s24
      %p136 = scmp.eq.s32.totalorder %s135, 0
      %s138 = sadd.s32 %s137, 1
      %s139 = scalar_select %p136, %s137, %s138
      %p142 = pneg %p136
      %p143 = scmp.eq.s32.totalorder %s17, 1
      %p144 = por %p142, %p143
      %p145 = scmp.ne.s32.totalorder %s137, %s140
      %p146 = scmp.eq.s32.totalorder %s17, 0
      %p147 = por %p145, %p146
      %p148 = scmp.ne.s32.totalorder %s137, %s140
      %p149 = scmp.eq.s32.totalorder %s22, 1
      %p150 = por %p148, %p149
      %p151 = scmp.ne.s32.totalorder %s140, %s141
      %p152 = scmp.eq.s32.totalorder %s22, 0
      %p153 = por %p151, %p152
      %p154 = scmp.ne.s32.totalorder %s140, %s141
      %p155 = scmp.eq.s32.totalorder %s23, 1
      %p156 = por %p154, %p155
      %p158 = scmp.ne.s32.totalorder %s141, %s157
      %p159 = scmp.eq.s32.totalorder %s23, 0
      %p160 = por %p158, %p159
      %p161 = scmp.le.s32.totalorder 1, %s17
      %p162 = scmp.lt.s32.totalorder %s17, 3
      %p163 = pnand %p161, %p162
      %p164 = pneg %p163
      // Predicated region
      $region9: #{tpu_custom_call.1} parent=5 // pred_check
        _
      $region10: #{tpu_custom_call.1} parent=5 // pred_check_branch
        %166 = sbr.rel (%p163) target = $region12
      $region11: #{tpu_custom_call.1} parent=5 // pred_region
        %s167 = ssub.s32 %s17, 1
        // Predicated region
        $region13: #{tpu_custom_call.1} parent=11 // pred_check
          %p168 = pneg %p64
        $region14: #{tpu_custom_call.1} parent=11 // pred_check_branch
          %170 = sbr.rel (%p168) target = $region16
        $region15: #{tpu_custom_call.1} parent=11 // pred_region
          _
        $region16: #{tpu_custom_call.1} parent=11 // pred_fallthru
          _
        // Predicated region
        $region17: #{tpu_custom_call.1} parent=11 // pred_check
          %p171 = pneg %p85
        $region18: #{tpu_custom_call.1} parent=11 // pred_check_branch
          %173 = sbr.rel (%p171) target = $region20
        $region19: #{tpu_custom_call.1} parent=11 // pred_region
          _
        $region20: #{tpu_custom_call.1} parent=11 // pred_fallthru
          _
        // Predicated region
        $region21: #{tpu_custom_call.1} parent=11 // pred_check
          %p174 = pneg %p106
        $region22: #{tpu_custom_call.1} parent=11 // pred_check_branch
          %176 = sbr.rel (%p174) target = $region24
        $region23: #{tpu_custom_call.1} parent=11 // pred_region
          _
        $region24: #{tpu_custom_call.1} parent=11 // pred_fallthru
          _
        // Predicated region
        $region25: #{tpu_custom_call.1} parent=11 // pred_check
          %p177 = pneg %p127
        $region26: #{tpu_custom_call.1} parent=11 // pred_check_branch
          %179 = sbr.rel (%p177) target = $region28
        $region27: #{tpu_custom_call.1} parent=11 // pred_region
          _
        $region28: #{tpu_custom_call.1} parent=11 // pred_fallthru
          _
      $region12: #{tpu_custom_call.1} parent=5 // pred_fallthru
        _
      %p180 = scmp.lt.s32.totalorder %s17, 2
      // Predicated region
      $region29: #{tpu_custom_call.1} parent=5 // pred_check
        %p181 = pneg %p180
      $region30: #{tpu_custom_call.1} parent=5 // pred_check_branch
        %183 = sbr.rel (%p181) target = $region32
      $region31: #{tpu_custom_call.1} parent=5 // pred_region
        // Predicated region
        $region33: #{tpu_custom_call.1} parent=31 // pred_check
          %p184 = pneg %p37
        $region34: #{tpu_custom_call.1} parent=31 // pred_check_branch
          %186 = sbr.rel (%p184) target = $region36
        $region35: #{tpu_custom_call.1} parent=31 // pred_region
          %s187 = sand.u32 %s27, 1
          %s188 = scalar_lea.sflag [#allocation3], %s187
          %s189 = sand.u32 %s27, 1
          %s190 = smul.addr %s189, 8
          %s191 = scalar_lea.vmem [#allocation2], %s190
          %s193 = ssub.s32 128, 128
          %194 = vsyncadd %s188, %s193
          %s195 = smul.addr %s17, 2
          %s196 = smul.addr %s195, 64
          %s197 = scalar_lea.hbm %s0, %s196
          %s199 = sshll.u32 %s191, 4
          %s200 = int_to_ptr.vmem [resolvable:$true] %s199
          %202 = dma.hbm_to_vmem [thread:$0]  %s197, 128, %s200, %s188
        $region36: #{tpu_custom_call.1} parent=31 // pred_fallthru
          _
      $region32: #{tpu_custom_call.1} parent=5 // pred_fallthru
        _
      %p203 = scmp.le.s32.totalorder 1, %s17
      %p204 = scmp.lt.s32.totalorder %s17, 3
      %p205 = pnand %p203, %p204
      %p206 = pneg %p205
      // Predicated region
      $region37: #{tpu_custom_call.1} parent=5 // pred_check
        _
      $region38: #{tpu_custom_call.1} parent=5 // pred_check_branch
        %208 = sbr.rel (%p205) target = $region40
      $region39: #{tpu_custom_call.1} parent=5 // pred_region
        %s209 = ssub.s32 %s17, 1
        %s210 = sand.u32 %s30, 1
        %s211 = scalar_lea.sflag [#allocation3], %s210
        %s212 = sand.u32 %s30, 1
        %s213 = smul.addr %s212, 8
        %s214 = scalar_lea.vmem [#allocation2], %s213
        // Predicated region
        $region41: #{tpu_custom_call.1} parent=39 // pred_check
          %p215 = pneg %p43
        $region42: #{tpu_custom_call.1} parent=39 // pred_check_branch
          %217 = sbr.rel (%p215) target = $region44
        $region43: #{tpu_custom_call.1} parent=39 // pred_region
          %218 = dma.done %s211, 128
        $region44: #{tpu_custom_call.1} parent=39 // pred_fallthru
          _
        %s219 = sand.u32 %s30, 1
        %s220 = scalar_lea.sflag [#allocation3], %s219
        %s221 = sand.u32 %s30, 1
        %s222 = smul.addr %s221, 8
        %s223 = scalar_lea.vmem [#allocation2], %s222
        %p224 = pneg %p43
        %p225 = pneg %p40
        %p226 = pneg %p64
        %p227 = pneg %p61
        %p228 = pneg %p85
        %p229 = pneg %p82
        %p230 = pneg %p106
        %p231 = pneg %p103
        %p232 = pneg %p127
        %p233 = pneg %p124
        %p234 = pneg %p153
        %p235 = pneg %p150
        %s236 = sand.u32 %s140, 1
        %s237 = scalar_lea.sflag [#allocation4], %s236
        %s238 = sand.u32 %s140, 1
        %s239 = smul.addr %s238, 8
        %s240 = scalar_lea.vmem [#allocation5], %s239
        %v241 = vld [vmem:[%s214] sm:$0xff]
        %v243 = vrot.slane %v241, 4
        %v245 = vadd.f32 %v241, %v243
        %vm246 = vcmask 1043456
        %v247 = vsel %vm246, %v245, 0.0
        %248 = vadd.xlane.f32.xlu0 %v247
        %v249 = vpop.xlane.xlu0 %248
        %v250 = vmul.f32 %v249, 0.00390625
        %v251 = vld [vmem:[%s1] sm:$0xf]
        %v252 = vld [vmem:[%s2] sm:$0x1]
        %v253 = vld [vmem:[%s3] sm:$0x3]
        %v254 = vld [vmem:[%s4] sm:$0x1]
        %v255 = vmul.f32 %v250, %v251
        %vm256 = vcmask 11264
        %v257 = vsel %vm256, %v255, 0.0
        %v258 = vrot.slane %v257, 4
        %v259 = vadd.f32 %v257, %v258
        %v260 = vrot.slane %v259, 2
        %v261 = vadd.f32 %v259, %v260
        %v262 = vrot.slane %v261, 1
        %v263 = vadd.f32 %v261, %v262
        %v264 = vadd.f32 %v263, %v252
        %v265 = vmax.f32 %v264, 0.0
        %v266 = vlaneseq
        %v267 = vshrl.u32 %v266, 7
        %v268 = vsub.s32 0, %v267
        %v269 = vrot.slane %v265, %v268
        %271 = vbcast.lane.b32.xlu0 %v269, 256
        %v272 = vpop.permute.xlu0 %271
        %v273 = vmul.f32 %v272, %v253
        %vm274 = vcmask 25600
        %v275 = vsel %vm274, %v273, 0.0
        %v276 = vrot.slane %v275, 4
        %v277 = vadd.f32 %v275, %v276
        %v278 = vrot.slane %v277, 2
        %v279 = vadd.f32 %v277, %v278
        %v280 = vrot.slane %v279, 1
        %v281 = vadd.f32 %v279, %v280
        %v282 = vadd.f32 %v281, %v254
        %v283 = vxor.u32 %v282, 2147483648
        %v284 = vmul.f32 %v283, 1.442695
        %v285 = vpow.pop %v284
        %v286 = vadd.f32 %v285, 1.0
        %v287 = vrcp.pop %v286
        %v288 = vmul.f32 1.0, %v287
        %v289 = vlaneseq
        %v290 = vshrl.u32 %v289, 7
        %v291 = vsub.s32 0, %v290
        %v292 = vrot.slane %v288, %v291
        %294 = vbcast.lane.b32.xlu0 %v292, 256
        %v295 = vpop.permute.xlu0 %294
        %v298 = vunpack.c.l.s4 839922192
        %v299 = vunpack.c.0.s8 %v298
        %v300 = vlaneseq
        %v301 = vshrl.u32 %v300, 7
        %v302 = vsub.s32 %v299, %v301
        %v303 = vrot.slane %v295, %v302
        %v305 = vmul.f32 %v241, %v303
        %306 = vst [vmem:[%s240] sm:$0xff] %v305
        %s307 = sand.u32 %s140, 1
        %s308 = scalar_lea.sflag [#allocation4], %s307
        %s309 = sand.u32 %s140, 1
        %s310 = smul.addr %s309, 8
        %s311 = scalar_lea.vmem [#allocation5], %s310
        // Predicated region
        $region45: #{tpu_custom_call.1} parent=39 // pred_check
          %p312 = pneg %p150
        $region46: #{tpu_custom_call.1} parent=39 // pred_check_branch
          %314 = sbr.rel (%p312) target = $region48
        $region47: #{tpu_custom_call.1} parent=39 // pred_region
          %s316 = ssub.s32 128, 128
          %317 = vsyncadd %s308, %s316
          %s318 = smul.addr %s22, 2
          %s319 = smul.addr %s318, 64
          %s320 = scalar_lea.hbm %s5, %s319
          %s322 = sshll.u32 %s311, 4
          %s323 = int_to_ptr.vmem [resolvable:$true] %s322
          %325 = dma.vmem_to_hbm [thread:$0]  %s323, 128, %s320, %s308
        $region48: #{tpu_custom_call.1} parent=39 // pred_fallthru
          _
      $region40: #{tpu_custom_call.1} parent=5 // pred_fallthru
        _
      %p326 = scmp.le.s32.totalorder 2, %s17
      // Predicated region
      $region49: #{tpu_custom_call.1} parent=5 // pred_check
        %p327 = pneg %p326
      $region50: #{tpu_custom_call.1} parent=5 // pred_check_branch
        %329 = sbr.rel (%p327) target = $region52
      $region51: #{tpu_custom_call.1} parent=5 // pred_region
        %s330 = ssub.s32 %s17, 2
        // Predicated region
        $region53: #{tpu_custom_call.1} parent=51 // pred_check
          %p331 = pneg %p156
        $region54: #{tpu_custom_call.1} parent=51 // pred_check_branch
          %333 = sbr.rel (%p331) target = $region56
        $region55: #{tpu_custom_call.1} parent=51 // pred_region
          %s334 = sand.u32 %s141, 1
          %s335 = scalar_lea.sflag [#allocation4], %s334
          %s336 = sand.u32 %s141, 1
          %s337 = smul.addr %s336, 8
          %s338 = scalar_lea.vmem [#allocation5], %s337
          %339 = dma.done %s335, 128
        $region56: #{tpu_custom_call.1} parent=51 // pred_fallthru
          _
      $region52: #{tpu_custom_call.1} parent=5 // pred_fallthru
        _
    $region6: #{tpu_custom_call.1} parent=1 // loop_footer
      %s21 = sadd.s32 1, %s17
    $region7: #{tpu_custom_call.1} parent=1 // loop_footer_branch
      %16 = sbr.rel target = $region3
    $region8: #{tpu_custom_call.1} parent=1 // loop_exit
      _
    %340 = vsyncpa [#allocation3], 1
    %s341 = scalar_lea.sflag [#allocation3], 1
    %342 = vsyncpa %s341, 1
    %343 = vsyncpa [#allocation4], 1
    %s344 = scalar_lea.sflag [#allocation4], 1
    %345 = vsyncpa %s344, 1

</llo_original>
